<compile_context>
chip_gen: v5e
topology: v5e:2x2
jax: 0.10.0
libtpu: 0.0.40
codegen_flags: <defaults>
</compile_context>

<pallas_src>
import jax
import jax.numpy as jnp
from jax.experimental import pallas as pl
from jax.experimental.pallas import tpu as pltpu


def _round_up(x, m):
    return ((x + m - 1) // m) * m


def _sublane_multiple(dtype):
    """Rows per packed vreg sublane group for a dtype (8 f32, 16 bf16, 32 8-bit)."""
    itemsize = jnp.dtype(dtype).itemsize
    if itemsize >= 4:
        return 8
    if itemsize == 2:
        return 16
    return 32


def _vmem_budget_and_limit(requested=None):
    """Generation-aware VMEM working-set budget + scoped-VMEM compiler limit."""
    try:
        info = pltpu.get_tpu_info()
        cap = int(getattr(info, "vmem_capacity_bytes", 0)) or (64 << 20)
    except Exception:  # no TPU info available -> assume v7x-sized VMEM (safe everywhere)
        cap = 64 << 20
    if requested is None:
        # ~60% of physical: ~38 MiB on v7x (64 MiB), ~77 MiB on v5e/v6e (128 MiB).
        budget = min(int(cap * 0.6), 96 << 20)
    else:
        budget = min(int(requested), int(cap * 0.75))
    budget = max(budget, 8 << 20)
    # Headroom for Mosaic internal scratch, but never above physical capacity.
    limit = min(max(int(budget * 1.3), budget + (2 << 20)), cap)
    return budget, limit


# ---------------------------------------------------------------------------
# Kernels
# ---------------------------------------------------------------------------

def _linear_kernel_single_k(x_ref, w_ref, b_ref, o_ref):
    # Whole reduction in one tile: write (x @ w + b) straight to the output,
    # no accumulator scratch, single unmasked lane-dense store.
    o_ref[...] = (jnp.dot(x_ref[...], w_ref[...],
                          preferred_element_type=jnp.float32)
                  + b_ref[...]).astype(o_ref.dtype)


def _linear_kernel_multi_k(x_ref, w_ref, b_ref, o_ref, acc_ref):
    # K-resident f32 accumulator; output written once on the last K step.
    k = pl.program_id(2)

    @pl.when(k == 0)
    def _():
        acc_ref[...] = jnp.zeros_like(acc_ref)

    acc_ref[...] += jnp.dot(x_ref[...], w_ref[...],
                            preferred_element_type=jnp.float32)

    @pl.when(k == pl.num_programs(2) - 1)
    def _():
        o_ref[...] = (acc_ref[...] + b_ref[...]).astype(o_ref.dtype)


# ---------------------------------------------------------------------------
# Module wrapper (weights prepared once, forward only touches x)
# ---------------------------------------------------------------------------

class ClipMappingPallas:
    """y = x @ W.T + b (torch nn.Linear semantics, W is (num_vector_dim, feat_in)).

    Weight-side glue (transpose, pad to lane-dense extents, dtype cast, bias
    pad/cast) is done ONCE at construction. Each __call__ only pads/casts x.

    mxu_dtype=jnp.bfloat16 gives the fast MXU path (f32 accumulation); it
    diverges from f32 nn.Linear by up to ~5e-2 relative. Default (None) keeps
    exact f32 semantics.
    """

    def __init__(self, w, b, *, tm=512, tn=512, tk=None, mxu_dtype=None,
                 out_dtype=None, vmem_budget_bytes=None, weight_buffer_count=2):
        N, K = w.shape
        assert b.shape == (N,), f"bias shape {b.shape} != ({N},)"
        self.N, self.K = N, K
        self.out_dtype = out_dtype
        self.in_dtype = jnp.dtype(mxu_dtype) if mxu_dtype is not None else jnp.dtype(w.dtype)
        self.weight_buffer_count = int(weight_buffer_count)
        self.sub_m = _sublane_multiple(self.in_dtype)

        budget, limit = _vmem_budget_and_limit(vmem_budget_bytes)
        self.vmem_limit_bytes = limit

        in_bytes = jnp.dtype(self.in_dtype).itemsize
        out_bytes = jnp.dtype(out_dtype).itemsize if out_dtype is not None else 4

        # Lane-dense padded extents of the static (weight-side) dims.
        K_pad0 = _round_up(K, 128)
        N_pad0 = _round_up(N, 128)

        # Tile choice: prefer 256-multiples for the MXU N dim (v6e/v7x 2x256x256),
        # full padded K by default (drops the K loop + accumulator), tm capped at
        # the request and aligned to the dtype's sublane packing.
        if N_pad0 >= 256:
            tn_ = min(_round_up(tn, 256), N_pad0)
        else:
            tn_ = N_pad0
        tk_ = K_pad0 if tk is None else min(_round_up(tk, 128), K_pad0)
        tm_cap = max(self.sub_m, _round_up(tm, self.sub_m))

        wbuf = max(2, self.weight_buffer_count)

        def vmem_est(tm__, tn__, tk__):
            single = tk__ >= K_pad0
            est = (2 * tm__ * tk__ * in_bytes        # x tile, double-buffered
                   + wbuf * tk__ * tn__ * in_bytes   # w tile, wbuf-deep
                   + 2 * tn__ * 4                    # bias tile
                   + 2 * tm__ * tn__ * out_bytes)    # out tile, double-buffered
            if not single:
                est += tm__ * tn__ * 4               # f32 accumulator scratch
            return est

        # Shrink order: tk first (trip-count only, no extra HBM traffic),
        # then tn (multiplies X traffic), then tm last (multiplies W traffic).
        while vmem_est(tm_cap, tn_, tk_) > budget and tk_ > 128:
            tk_ = max(128, _round_up(tk_ // 2, 128))
        while vmem_est(tm_cap, tn_, tk_) > budget and tn_ > 128:
            tn_ = max(128, _round_up(tn_ // 2, 128))
        while vmem_est(tm_cap, tn_, tk_) > budget and tm_cap > self.sub_m:
            tm_cap = max(self.sub_m, _round_up(tm_cap // 2, self.sub_m))

        self.tm_cap, self.tn, self.tk = tm_cap, tn_, tk_
        self.K_pad = _round_up(K_pad0, tk_)
        self.N_pad = _round_up(N_pad0, tn_)

        # One-time weight/bias prep: transpose to (K, N), cast, zero-pad.
        w_t = jnp.transpose(w).astype(self.in_dtype)                    # (K, N)
        self.w_p = jnp.pad(w_t, ((0, self.K_pad - K), (0, self.N_pad - N)))
        self.b_p = jnp.pad(b.astype(jnp.float32),
                           (0, self.N_pad - N)).reshape(1, self.N_pad)

    # -- per-call forward -------------------------------------------------

    def _weight_spec(self, single_k):
        idx = (lambda i, j: (0, j)) if single_k else (lambda i, j, k: (k, j))
        if self.weight_buffer_count != 2:
            return pl.BlockSpec((self.tk, self.tn), idx,
                                pipeline_mode=pl.Buffered(self.weight_buffer_count))
        return pl.BlockSpec((self.tk, self.tn), idx)

    def __call__(self, x):
        assert x.shape[-1] == self.K, f"last dim {x.shape[-1]} != feat_in {self.K}"
        lead_shape = x.shape[:-1]
        x2 = x.reshape(-1, self.K)
        M = x2.shape[0]
        out_dtype = self.out_dtype or x.dtype
        out_bytes = jnp.dtype(out_dtype).itemsize
        in_bytes = jnp.dtype(self.in_dtype).itemsize

        tm = min(self.tm_cap, _round_up(max(M, 1), self.sub_m))
        M_pad = _round_up(M, tm)

        x_p = jnp.pad(x2, ((0, M_pad - M), (0, self.K_pad - self.K))).astype(self.in_dtype)

        grid_i = M_pad // tm
        grid_j = self.N_pad // self.tn
        grid_k = self.K_pad // self.tk
        single_k = grid_k == 1

        # Streaming-aware cost hint: W is re-read per M tile, X per N tile.
        cost = pl.CostEstimate(
            flops=2 * M_pad * self.K_pad * self.N_pad,
            transcendentals=0,
            bytes_accessed=(x_p.size * in_bytes * grid_j
                            + self.w_p.size * in_bytes * grid_i
                            + self.b_p.size * 4 * grid_i
                            + M_pad * self.N_pad * out_bytes),
        )

        if single_k:
            grid = (grid_i, grid_j)
            in_specs = [
                pl.BlockSpec((tm, self.tk), lambda i, j: (i, 0)),
                self._weight_spec(True),
                pl.BlockSpec((1, self.tn), lambda i, j: (0, j)),
            ]
            out_specs = pl.BlockSpec((tm, self.tn), lambda i, j: (i, j))
            scratch = []
            kernel = _linear_kernel_single_k
            semantics = ("parallel", "parallel")
        else:
            grid = (grid_i, grid_j, grid_k)
            in_specs = [
                pl.BlockSpec((tm, self.tk), lambda i, j, k: (i, k)),
                self._weight_spec(False),
                pl.BlockSpec((1, self.tn), lambda i, j, k: (0, j)),
            ]
            out_specs = pl.BlockSpec((tm, self.tn), lambda i, j, k: (i, j))
            scratch = [pltpu.VMEM((tm, self.tn), jnp.float32)]
            kernel = _linear_kernel_multi_k
            semantics = ("parallel", "parallel", "arbitrary")

        out_padded = pl.pallas_call(
            kernel,
            out_shape=jax.ShapeDtypeStruct((M_pad, self.N_pad), out_dtype),
            grid_spec=pltpu.PrefetchScalarGridSpec(
                num_scalar_prefetch=0,
                grid=grid,
                in_specs=in_specs,
                out_specs=out_specs,
                scratch_shapes=scratch,
            ),
            compiler_params=pltpu.CompilerParams(
                dimension_semantics=semantics,
                vmem_limit_bytes=self.vmem_limit_bytes,
            ),
            cost_estimate=cost,
        )(x_p, self.w_p, self.b_p)

        out = out_padded[:M, :self.N]
        return out.reshape(lead_shape + (self.N,))


def clip_mapping_forward(x, w, b, **kwargs):
    """One-off convenience wrapper: y = x @ w.T + b (w is (N, K), b is (N,))."""
    return ClipMappingPallas(w, b, **kwargs)(x)


def init_clip_mapping_params(key, feat_in, num_vector_dim, dtype=jnp.float32):
    """Mirrors the PyTorch module init:
       - weight: kaiming_normal_ (fan_in mode, relu gain) on (num_vector_dim, feat_in)
       - bias:   default nn.Linear init, U(-1/sqrt(fan_in), 1/sqrt(fan_in))
    """
    kw, kb = jax.random.split(key)
    std = (2.0 / feat_in) ** 0.5
    w = std * jax.random.normal(kw, (num_vector_dim, feat_in), dtype=dtype)
    bound = 1.0 / (feat_in ** 0.5)
    b = jax.random.uniform(kb, (num_vector_dim,), dtype=dtype,
                           minval=-bound, maxval=bound)
    return w, b


if __name__ == "__main__":
    key = jax.random.PRNGKey(0)
    k_x, k_p, k_x2, k_p2, k_x3 = jax.random.split(key, 5)

    # --- primary small-shape check (single-K fast path, exact f32 semantics) ---
    batch, feat_in, num_vector_dim = 8, 32, 16
    x = jax.random.normal(k_x, (batch, feat_in), dtype=jnp.float32)
    w, b = init_clip_mapping_params(k_p, feat_in, num_vector_dim)
    y_ref = x @ w.T + b

    mapping = ClipMappingPallas(w, b)          # weights prepared once
    y = mapping(x)
    jax.block_until_ready(y)
    assert y.shape == (batch, num_vector_dim)
    assert jnp.allclose(y, y_ref, atol=1e-5, rtol=1e-5)

    # --- leading-dim broadcasting, like nn.Linear on (..., feat_in) ---
    x3 = jax.random.normal(k_x3, (2, 5, feat_in), dtype=jnp.float32)
    y3 = mapping(x3)
    jax.block_until_ready(y3)
    assert y3.shape == (2, 5, num_vector_dim)
    assert jnp.allclose(y3, x3 @ w.T + b, atol=1e-5, rtol=1e-5)

    # --- multi-K accumulator path (forced small tk) ---
    M2, K2, N2 = 64, 512, 48
    x2 = jax.random.normal(k_x2, (M2, K2), dtype=jnp.float32)
    w2, b2 = init_clip_mapping_params(k_p2, K2, N2)
    y2 = clip_mapping_forward(x2, w2, b2, tk=128)
    jax.block_until_ready(y2)
    assert jnp.allclose(y2, x2 @ w2.T + b2, atol=1e-4, rtol=1e-4)

    # --- bf16 MXU inputs, f32 accumulate (v6e/v7x fast path) ---
    y_bf16 = clip_mapping_forward(x, w, b, mxu_dtype=jnp.bfloat16,
                                  out_dtype=jnp.float32)
    jax.block_until_ready(y_bf16)
    assert jnp.allclose(y_bf16, y_ref, atol=5e-2, rtol=5e-2)

    print("KERNEL_OK")
</pallas_src>

<mosaic_0001>
module attributes {stable_mosaic.version = 11 : i64} {
  func.func @_linear_kernel_single_k(%arg0: i32, %arg1: i32, %arg2: memref<8x128xf32, #tpu.memory_space<vmem>>, %arg3: memref<128x128xf32, #tpu.memory_space<vmem>>, %arg4: memref<1x128xf32, #tpu.memory_space<vmem>>, %arg5: memref<8x128xf32, #tpu.memory_space<vmem>>) attributes {dimension_semantics = [#tpu.dimension_semantics<parallel>, #tpu.dimension_semantics<parallel>], iteration_bounds = array<i64: 1, 1>, scalar_prefetch = 0 : i64, scratch_operands = 0 : i64, tpu.core_type = #tpu.core_type<tc>, window_params = [{transform_indices = @transform_0, window_bounds = array<i64: 8, 128>}, {transform_indices = @transform_1, window_bounds = array<i64: 128, 128>}, {transform_indices = @transform_2, window_bounds = array<i64: 1, 128>}, {transform_indices = @transform_3, window_bounds = array<i64: 8, 128>}]} {
    %c0 = arith.constant 0 : index
    %c0_0 = arith.constant 0 : index
    %0 = vector.load %arg2[%c0, %c0_0] : memref<8x128xf32, #tpu.memory_space<vmem>>, vector<8x128xf32>
    %c0_1 = arith.constant 0 : index
    %c0_2 = arith.constant 0 : index
    %1 = vector.load %arg3[%c0_1, %c0_2] : memref<128x128xf32, #tpu.memory_space<vmem>>, vector<128x128xf32>
    %cst = arith.constant dense<0.000000e+00> : vector<8x128xf32>
    %2 = tpu.matmul %0, %1, %cst {dimension_numbers = #tpu.dot_dimension_numbers<[1], [0], [0], [1], [0, 0, 1, 1], [], []>} : vector<8x128xf32>, vector<128x128xf32>, vector<8x128xf32> -> vector<8x128xf32>
    %c0_3 = arith.constant 0 : index
    %c0_4 = arith.constant 0 : index
    %3 = vector.load %arg4[%c0_3, %c0_4] : memref<1x128xf32, #tpu.memory_space<vmem>>, vector<1x128xf32>
    %4 = vector.broadcast %3 : vector<1x128xf32> to vector<8x128xf32>
    %5 = arith.addf %2, %4 : vector<8x128xf32>
    %c0_5 = arith.constant 0 : index
    %c0_6 = arith.constant 0 : index
    %6 = vector.load %arg5[%c0_5, %c0_6] : memref<8x128xf32, #tpu.memory_space<vmem>>, vector<8x128xf32>
    tpu.vector_store %arg5[%c0_5, %c0_6], %5 {strides = array<i32>} : memref<8x128xf32, #tpu.memory_space<vmem>>, vector<8x128xf32>,
    return
  }
  func.func @transform_0(%arg0: i32, %arg1: i32) -> (i32, i32) {
    %c0_i32 = arith.constant 0 : i32
    %c0_i32_0 = arith.constant 0 : i32
    return %arg0, %c0_i32 : i32, i32
  }
  func.func @transform_1(%arg0: i32, %arg1: i32) -> (i32, i32) {
    %c0_i32 = arith.constant 0 : i32
    %c0_i32_0 = arith.constant 0 : i32
    return %c0_i32, %arg1 : i32, i32
  }
  func.func @transform_2(%arg0: i32, %arg1: i32) -> (i32, i32) {
    %c0_i32 = arith.constant 0 : i32
    %c0_i32_0 = arith.constant 0 : i32
    return %c0_i32, %arg1 : i32, i32
  }
  func.func @transform_3(%arg0: i32, %arg1: i32) -> (i32, i32) {
    %c0_i32 = arith.constant 0 : i32
    return %arg0, %arg1 : i32, i32
  }
}

</mosaic_0001>

<llo_original>
// kernel: tpu_custom_call.1
$region0: #{tpu_custom_call.1}
  #allocation0 [shape = 'u32[]', space=smem, size = 0x4, offset = 0x4, fixed_abs, tag = 'smem constant byte address 0x4 - core index']
  #allocation1 [shape = 'u32[72,128]{1,0:T(1,128)}', space=vmem, size = 0x9000, scoped, tag = 'internal scratch']
  %s0 = inlined_call_operand.hbm [shape: f32[8,128], index: 0, kind: input, shape index: {}]
  %s1 = inlined_call_operand.hbm [shape: f32[128,128], index: 1, kind: input, shape index: {}]
  %s2 = inlined_call_operand.vmem [shape: f32[1,128], index: 2, kind: input, shape index: {}]
  %s3 = inlined_call_operand.hbm [shape: f32[8,128], index: 3, kind: output, shape index: {}]
  %s4 = sld [smem:[#allocation0]]
  $region30: #{tpu_custom_call.1} parent=0
    _
  %s6 = ssub.s32 1, %s4
  %s7 = scalar_select 0, %s6, %s4
  $region1: #{tpu_custom_call.1} parent=0
    #allocation2 [shape = 'u8[4096]{0}', space=vmem, size = 0x1000, scoped, tag = 'input window, operand 0, single buffered']
    #allocation3 [shape = 's32[1]{0}', space=sflag, size = 0x4, scoped, tag = 'scoped memory for tpu_custom_call.1']
    #allocation4 [shape = 's32[1]{0}', space=sflag, size = 0x4, scoped, tag = 'scoped memory for tpu_custom_call.1']
    #allocation5 [shape = 'u8[65536]{0}', space=vmem, size = 0x10000, scoped, tag = 'input window, operand 1, single buffered']
    #allocation6 [shape = 's32[1]{0}', space=sflag, size = 0x4, scoped, tag = 'scoped memory for tpu_custom_call.1']
    #allocation7 [shape = 'u8[4096]{0}', space=vmem, size = 0x1000, scoped, tag = 'output window, operand 0, single buffered']
    %8 = vsyncpa [#allocation3], 0
    %9 = vsyncpa [#allocation6], 0
    %10 = vsyncpa [#allocation4], 0
    // Predicated region
    $region2: #{tpu_custom_call.1} parent=1 // pred_check
      _
    $region3: #{tpu_custom_call.1} parent=1 // pred_check_branch
      %12 = sbr.rel (0) target = $region5
    $region4: #{tpu_custom_call.1} parent=1 // pred_region
      %14 = vsyncadd [#allocation3], 0
      %s16 = sshll.u32 %s0, 4
      %s17 = int_to_ptr.hbm [resolvable:$true] %s16
      %s18 = sshll.u32 [#allocation2], 4
      %s19 = int_to_ptr.vmem [resolvable:$true] %s18
      %21 = dma.hbm_to_vmem [thread:$0]  %s17, 128, %s19, [#allocation3]
    $region5: #{tpu_custom_call.1} parent=1 // pred_fallthru
      _
    // Predicated region
    $region6: #{tpu_custom_call.1} parent=1 // pred_check
      _
    $region7: #{tpu_custom_call.1} parent=1 // pred_check_branch
      %23 = sbr.rel (0) target = $region9
    $region8: #{tpu_custom_call.1} parent=1 // pred_region
      %25 = vsyncadd [#allocation6], 0
      %s26 = sshll.u32 %s1, 4
      %s27 = int_to_ptr.hbm [resolvable:$true] %s26
      %s28 = sshll.u32 [#allocation5], 4
      %s29 = int_to_ptr.vmem [resolvable:$true] %s28
      %34 = dma.hbm_to_vmem [thread:$0]  %s27, 2048, %s29, [#allocation6], 128, 128, 8
    $region9: #{tpu_custom_call.1} parent=1 // pred_fallthru
      _
    // Predicated region
    $region10: #{tpu_custom_call.1} parent=1 // pred_check
      _
    $region11: #{tpu_custom_call.1} parent=1 // pred_check_branch
      %36 = sbr.rel (0) target = $region13
    $region12: #{tpu_custom_call.1} parent=1 // pred_region
      _
    $region13: #{tpu_custom_call.1} parent=1 // pred_fallthru
      _
    // Predicated region
    $region14: #{tpu_custom_call.1} parent=1 // pred_check
      _
    $region15: #{tpu_custom_call.1} parent=1 // pred_check_branch
      %38 = sbr.rel (0) target = $region17
    $region16: #{tpu_custom_call.1} parent=1 // pred_region
      %40 = dma.done [#allocation3], 128
    $region17: #{tpu_custom_call.1} parent=1 // pred_fallthru
      _
    // Predicated region
    $region18: #{tpu_custom_call.1} parent=1 // pred_check
      _
    $region19: #{tpu_custom_call.1} parent=1 // pred_check_branch
      %42 = sbr.rel (0) target = $region21
    $region20: #{tpu_custom_call.1} parent=1 // pred_region
      %44 = dma.done [#allocation6], 2048
    $region21: #{tpu_custom_call.1} parent=1 // pred_fallthru
      _
    %v45 = vld [vmem:[#allocation2] sm:$0xff]
    %v46 = vld [vmem:[#allocation5] sm:$0xff]
    %v47 = vld [vmem:[#allocation5 + $0x8] sm:$0xff]
    %v48 = vld [vmem:[#allocation5 + $0x10] sm:$0xff]
    %v49 = vld [vmem:[#allocation5 + $0x18] sm:$0xff]
    %v50 = vld [vmem:[#allocation5 + $0x20] sm:$0xff]
    %v51 = vld [vmem:[#allocation5 + $0x28] sm:$0xff]
    %v52 = vld [vmem:[#allocation5 + $0x30] sm:$0xff]
    %v53 = vld [vmem:[#allocation5 + $0x38] sm:$0xff]
    %v54 = vld [vmem:[#allocation5 + $0x40] sm:$0xff]
    %v55 = vld [vmem:[#allocation5 + $0x48] sm:$0xff]
    %v56 = vld [vmem:[#allocation5 + $0x50] sm:$0xff]
    %v57 = vld [vmem:[#allocation5 + $0x58] sm:$0xff]
    %v58 = vld [vmem:[#allocation5 + $0x60] sm:$0xff]
    %v59 = vld [vmem:[#allocation5 + $0x68] sm:$0xff]
    %v60 = vld [vmem:[#allocation5 + $0x70] sm:$0xff]
    %v61 = vld [vmem:[#allocation5 + $0x78] sm:$0xff]
    %v62 = vld [vmem:[%s2] sm:$0x1]
    %v64 = vperm.slane %v62, 0
    %66 = vmatpush.msra.mxu0 %v61
    %67 = vmatpush.msra.mxu0 %v60
    %68 = vmatpush.msra.mxu0 %v59
    %69 = vmatpush.msra.mxu0 %v58
    %70 = vmatpush.msra.mxu0 %v57
    %71 = vmatpush.msra.mxu0 %v56
    %72 = vmatpush.msra.mxu0 %v55
    %73 = vmatpush.msra.mxu0 %v54
    %74 = vmatpush.msra.mxu0 %v53
    %75 = vmatpush.msra.mxu0 %v52
    %76 = vmatpush.msra.mxu0 %v51
    %77 = vmatpush.msra.mxu0 %v50
    %78 = vmatpush.msra.mxu0 %v49
    %79 = vmatpush.msra.mxu0 %v48
    %80 = vmatpush.msra.mxu0 %v47
    %81 = vmatpush.msra.mxu0 %v46
    %82 = vmatmul.f32.gmra.mxu0 %v45
    %v83 = vpop.f32.mrf.mxu0
    %v84 = vadd.f32 %v64, %v83
    %85 = vdwg.mxu0
    %86 = vst [vmem:[#allocation7] sm:$0xff] %v84
    // Predicated region
    $region22: #{tpu_custom_call.1} parent=1 // pred_check
      _
    $region23: #{tpu_custom_call.1} parent=1 // pred_check_branch
      %88 = sbr.rel (0) target = $region25
    $region24: #{tpu_custom_call.1} parent=1 // pred_region
      %90 = vsyncadd [#allocation4], 0
      %s92 = sshll.u32 [#allocation7], 4
      %s93 = int_to_ptr.vmem [resolvable:$true] %s92
      %s94 = sshll.u32 %s3, 4
      %s95 = int_to_ptr.hbm [resolvable:$true] %s94
      %97 = dma.vmem_to_hbm [thread:$0]  %s93, 128, %s95, [#allocation4]
    $region25: #{tpu_custom_call.1} parent=1 // pred_fallthru
      _
    // Predicated region
    $region26: #{tpu_custom_call.1} parent=1 // pred_check
      _
    $region27: #{tpu_custom_call.1} parent=1 // pred_check_branch
      %99 = sbr.rel (0) target = $region29
    $region28: #{tpu_custom_call.1} parent=1 // pred_region
      %101 = dma.done [#allocation4], 128
    $region29: #{tpu_custom_call.1} parent=1 // pred_fallthru
      _
    %102 = vsyncpa [#allocation3], 1
    %103 = vsyncpa [#allocation6], 1
    %104 = vsyncpa [#allocation4], 1

</llo_original>
